<compile_context>
chip_gen: v7x
topology: tpu7x:2x2x1
jax: 0.10.0
libtpu: 0.0.40
codegen_flags: <defaults>
</compile_context>

<pallas_src>
import numpy as np
import jax
import jax.numpy as jnp
from jax.experimental import pallas as pl
from jax.experimental.pallas import tpu as pltpu


# JPEG luminance quantization table, matching DiffJPEG's utils.y_table
# (note the .T, exactly as in the reference implementation).
_Y_TABLE = np.array(
    [[16, 11, 10, 16, 24, 40, 51, 61],
     [12, 12, 14, 19, 26, 58, 60, 55],
     [14, 13, 16, 24, 40, 57, 69, 56],
     [14, 17, 22, 29, 51, 87, 80, 62],
     [18, 22, 37, 56, 68, 109, 103, 77],
     [24, 35, 55, 64, 81, 104, 113, 92],
     [49, 64, 78, 87, 103, 121, 120, 101],
     [72, 92, 95, 98, 112, 100, 103, 99]],
    dtype=np.float32).T


def _y_dequantize_kernel(x_ref, t_ref, o_ref):
    # x_ref: (TR, C) tile of packed, flattened 8x8 blocks
    # t_ref: (1, C)  scaled dequantization table (period-64 pattern along lanes)
    # o_ref: (TR, C)
    o_ref[...] = x_ref[...] * t_ref[...]   # (1, C) broadcasts over sublanes (VPU)


def y_dequantize(image, factor=1.0):
    """image: (..., 8, 8) DCT blocks -> image * (y_table * factor), same shape/dtype."""
    assert image.shape[-2:] == (8, 8), f"expected trailing (8,8) blocks, got {image.shape}"
    dt = image.dtype
    orig_shape = image.shape
    itemsize = np.dtype(dt).itemsize
    sub = max(8, 32 // itemsize)            # sublane multiple: 8 f32 / 16 bf16 / 32 int8

    # Flatten every 8x8 block to a row of 64 (contiguous reshape -> free).
    n_blocks = int(np.prod(orig_shape[:-2])) if len(orig_shape) > 2 else 1
    flat64 = image.reshape(n_blocks, 64)

    # Pack blocks per row so the lane (minor) dim is a dense multiple of 128.
    # Largest divisor first (wider lanes -> fewer store/DMA descriptor rows).
    pack = 1
    for p in (64, 32, 16, 8, 4, 2):
        if n_blocks % p == 0:
            pack = p
            break
    padded_blocks = n_blocks
    if pack == 1:
        # Odd block count: pad to a multiple of 8 so stores stay unmasked and
        # lane-dense (512 lanes); sliced back off after the kernel.
        pack = 8
        padded_blocks = ((n_blocks + 7) // 8) * 8
        flat64 = jnp.pad(flat64, ((0, padded_blocks - n_blocks), (0, 0)))

    rows, cols = padded_blocks // pack, 64 * pack
    flat = flat64.reshape(rows, cols)                 # free reshape

    # Scaled dequant table as one (1, cols) row. Built on the host in numpy for
    # static factor (no runtime XLA op); traced-factor path falls back to jnp.
    if isinstance(factor, (int, float, np.integer, np.floating)):
        row_np = np.tile((_Y_TABLE * float(factor)).reshape(64), pack)
        table_row = jnp.asarray(row_np.reshape(1, cols), dtype=dt)
    else:
        scaled = jnp.asarray(_Y_TABLE.reshape(64), dtype=jnp.float32) * factor
        table_row = jnp.tile(scaled, pack).reshape(1, cols).astype(dt)

    # Row-tile sizing: target ~8 MiB per step (amortizes ~0.35us/step overhead);
    # 2x in + 2x out double buffers ~= 32 MiB, fits under the 48 MiB scoped
    # limit on every generation (v7x physical VMEM is 64 MiB).
    row_bytes = cols * itemsize
    target_tile_bytes = 8 << 20
    tr = max(sub, (target_tile_bytes // row_bytes) // sub * sub)
    if tr >= rows:
        if rows > 2 * sub and rows * row_bytes > (4 << 20):
            # Keep >=2 grid steps so the "parallel" axis can shard across the
            # two TensorCores on v7x instead of collapsing to a single step.
            half = -(-rows // 2)
            tr = -(-half // sub) * sub
        else:
            tr = rows                                   # full dim (small input)
    grid = (pl.cdiv(rows, tr),)

    out = pl.pallas_call(
        _y_dequantize_kernel,
        out_shape=jax.ShapeDtypeStruct((rows, cols), dt),
        grid=grid,
        in_specs=[
            pl.BlockSpec((tr, cols), lambda r: (r, 0)),   # data tile
            pl.BlockSpec((1, cols), lambda r: (0, 0)),    # tiny resident table row
        ],
        out_specs=pl.BlockSpec((tr, cols), lambda r: (r, 0)),
        compiler_params=pltpu.CompilerParams(
            dimension_semantics=("parallel",),
            vmem_limit_bytes=48 * 1024 * 1024,
        ),
    )(flat, table_row)

    if padded_blocks != n_blocks:
        out = out.reshape(padded_blocks, 64)[:n_blocks]
    return out.reshape(orig_shape)


if __name__ == "__main__":
    key = jax.random.PRNGKey(0)
    k1, k2 = jax.random.split(key)
    factor = 1.0
    y_table = jnp.asarray(_Y_TABLE, dtype=jnp.float32)

    # Case 1: typical shape — 2 batches x 16 DCT blocks of 8x8 (divisible).
    img1 = jax.random.normal(k1, (2, 16, 8, 8), dtype=jnp.float32) * 32.0
    out1 = jax.block_until_ready(y_dequantize(img1, factor=factor))
    ref1 = img1 * (y_table * jnp.asarray(factor, dtype=jnp.float32))
    assert out1.shape == img1.shape, out1.shape
    assert out1.dtype == img1.dtype, out1.dtype
    if not bool(jnp.array_equal(out1, ref1)):
        raise AssertionError("Pallas kernel output mismatch (divisible block count)")

    # Case 2: odd block count (21 blocks) — exercises the pad-to-lane-dense path.
    img2 = jax.random.normal(k2, (3, 7, 8, 8), dtype=jnp.float32) * 32.0
    out2 = jax.block_until_ready(y_dequantize(img2, factor=factor))
    ref2 = img2 * (y_table * jnp.asarray(factor, dtype=jnp.float32))
    assert out2.shape == img2.shape, out2.shape
    assert out2.dtype == img2.dtype, out2.dtype
    if not bool(jnp.array_equal(out2, ref2)):
        raise AssertionError("Pallas kernel output mismatch (odd block count)")

    print("KERNEL_OK")
</pallas_src>

<mosaic_0001>
module attributes {stable_mosaic.version = 11 : i64} {
  func.func @_y_dequantize_kernel(%arg0: i32, %arg1: memref<1x2048xf32, #tpu.memory_space<vmem>>, %arg2: memref<1x2048xf32, #tpu.memory_space<vmem>>, %arg3: memref<1x2048xf32, #tpu.memory_space<vmem>>) attributes {dimension_semantics = [#tpu.dimension_semantics<parallel>], iteration_bounds = array<i64: 1>, scalar_prefetch = 0 : i64, scratch_operands = 0 : i64, tpu.core_type = #tpu.core_type<tc>, window_params = [{transform_indices = @transform_0, window_bounds = array<i64: 1, 2048>}, {pipeline_mode = #tpu.pipeline_mode<synchronous>, transform_indices = @transform_1, window_bounds = array<i64: 1, 2048>}, {transform_indices = @transform_2, window_bounds = array<i64: 1, 2048>}]} {
    %c0 = arith.constant 0 : index
    %c0_0 = arith.constant 0 : index
    %0 = vector.load %arg1[%c0, %c0_0] : memref<1x2048xf32, #tpu.memory_space<vmem>>, vector<1x2048xf32>
    %c0_1 = arith.constant 0 : index
    %c0_2 = arith.constant 0 : index
    %1 = vector.load %arg2[%c0_1, %c0_2] : memref<1x2048xf32, #tpu.memory_space<vmem>>, vector<1x2048xf32>
    %2 = arith.mulf %0, %1 : vector<1x2048xf32>
    %c0_3 = arith.constant 0 : index
    %c0_4 = arith.constant 0 : index
    %3 = vector.load %arg3[%c0_3, %c0_4] : memref<1x2048xf32, #tpu.memory_space<vmem>>, vector<1x2048xf32>
    tpu.vector_store %arg3[%c0_3, %c0_4], %2 {strides = array<i32>} : memref<1x2048xf32, #tpu.memory_space<vmem>>, vector<1x2048xf32>,
    return
  }
  func.func @transform_0(%arg0: i32) -> (i32, i32) {
    %c0_i32 = arith.constant 0 : i32
    %c0_i32_0 = arith.constant 0 : i32
    return %arg0, %c0_i32 : i32, i32
  }
  func.func @transform_1(%arg0: i32) -> (i32, i32) {
    %c0_i32 = arith.constant 0 : i32
    %c0_i32_0 = arith.constant 0 : i32
    %c0_i32_1 = arith.constant 0 : i32
    return %c0_i32, %c0_i32_0 : i32, i32
  }
  func.func @transform_2(%arg0: i32) -> (i32, i32) {
    %c0_i32 = arith.constant 0 : i32
    %c0_i32_0 = arith.constant 0 : i32
    return %arg0, %c0_i32 : i32, i32
  }
}

</mosaic_0001>

<llo_original>
// kernel: tpu_custom_call.1
$region0: #{tpu_custom_call.1}
  #allocation0 [shape = 'u32[]', space=smem, size = 0x4, offset = 0x4, fixed_abs, tag = 'smem constant byte address 0x4 - core index']
  #allocation1 [shape = 'u32[144,128]{1,0:T(1,128)}', space=vmem, size = 0x12000, scoped, tag = 'internal scratch']
  %s0 = inlined_call_operand.hbm [shape: f32[1,2048], index: 0, kind: input, shape index: {}]
  %s1 = inlined_call_operand.hbm [shape: f32[1,2048], index: 1, kind: input, shape index: {}]
  %s2 = inlined_call_operand.hbm [shape: f32[1,2048], index: 2, kind: output, shape index: {}]
  %s3 = sld [smem:[#allocation0]]
  $region26: #{tpu_custom_call.1} parent=0
    _
  %s5 = ssub.s32 1, %s3
  %s6 = scalar_select 0, %s5, %s3
  $region1: #{tpu_custom_call.1} parent=0
    #allocation2 [shape = 'u8[8192]{0}', space=vmem, size = 0x2000, scoped, tag = 'input window, operand 0, single buffered']
    #allocation3 [shape = 's32[1]{0}', space=sflag, size = 0x4, scoped, tag = 'scoped memory for tpu_custom_call.1']
    #allocation4 [shape = 's32[1]{0}', space=sflag, size = 0x4, scoped, tag = 'scoped memory for tpu_custom_call.1']
    #allocation5 [shape = 'u8[8192]{0}', space=vmem, size = 0x2000, scoped, tag = 'input window, operand 1, single buffered']
    #allocation6 [shape = 's32[1]{0}', space=sflag, size = 0x4, scoped, tag = 'scoped memory for tpu_custom_call.1']
    #allocation7 [shape = 'u8[8192]{0}', space=vmem, size = 0x2000, scoped, tag = 'output window, operand 0, single buffered']
    %7 = vsyncpa [#allocation3], 0
    %8 = vsyncpa [#allocation6], 0
    %9 = vsyncpa [#allocation4], 0
    // Predicated region
    $region2: #{tpu_custom_call.1} parent=1 // pred_check
      _
    $region3: #{tpu_custom_call.1} parent=1 // pred_check_branch
      %11 = sbr.rel (0) target = $region5
    $region4: #{tpu_custom_call.1} parent=1 // pred_region
      %s13 = ssub.s32 256, 256
      %14 = vsyncadd [#allocation3], %s13
      %s16 = sshll.u32 [#allocation2], 4
      %s17 = int_to_ptr.vmem [resolvable:$true] %s16
      %19 = dma.hbm_to_vmem [thread:$0]  %s0, 256, %s17, [#allocation3]
    $region5: #{tpu_custom_call.1} parent=1 // pred_fallthru
      _
    // Predicated region
    $region6: #{tpu_custom_call.1} parent=1 // pred_check
      _
    $region7: #{tpu_custom_call.1} parent=1 // pred_check_branch
      %21 = sbr.rel (0) target = $region9
    $region8: #{tpu_custom_call.1} parent=1 // pred_region
      %s23 = ssub.s32 256, 256
      %24 = vsyncadd [#allocation6], %s23
      %s26 = sshll.u32 [#allocation5], 4
      %s27 = int_to_ptr.vmem [resolvable:$true] %s26
      %29 = dma.hbm_to_vmem [thread:$0]  %s1, 256, %s27, [#allocation6]
    $region9: #{tpu_custom_call.1} parent=1 // pred_fallthru
      _
    // Predicated region
    $region10: #{tpu_custom_call.1} parent=1 // pred_check
      _
    $region11: #{tpu_custom_call.1} parent=1 // pred_check_branch
      %31 = sbr.rel (0) target = $region13
    $region12: #{tpu_custom_call.1} parent=1 // pred_region
      %32 = dma.done [#allocation3], 256
    $region13: #{tpu_custom_call.1} parent=1 // pred_fallthru
      _
    // Predicated region
    $region14: #{tpu_custom_call.1} parent=1 // pred_check
      _
    $region15: #{tpu_custom_call.1} parent=1 // pred_check_branch
      %34 = sbr.rel (0) target = $region17
    $region16: #{tpu_custom_call.1} parent=1 // pred_region
      %35 = dma.done [#allocation6], 256
    $region17: #{tpu_custom_call.1} parent=1 // pred_fallthru
      _
    %v36 = vld [vmem:[#allocation2] sm:$0xff]
    %v37 = vld [vmem:[#allocation2 + $0x8] sm:$0xff]
    %v38 = vld [vmem:[#allocation5] sm:$0xff]
    %v39 = vld [vmem:[#allocation5 + $0x8] sm:$0xff]
    %v40 = vmul.f32 %v36, %v38
    %v41 = vmul.f32 %v37, %v39
    %42 = vst [vmem:[#allocation7] sm:$0xff] %v40
    %43 = vst [vmem:[#allocation7 + $0x8] sm:$0xff] %v41
    // Predicated region
    $region18: #{tpu_custom_call.1} parent=1 // pred_check
      _
    $region19: #{tpu_custom_call.1} parent=1 // pred_check_branch
      %45 = sbr.rel (0) target = $region21
    $region20: #{tpu_custom_call.1} parent=1 // pred_region
      %s47 = ssub.s32 256, 256
      %48 = vsyncadd [#allocation4], %s47
      %s50 = sshll.u32 [#allocation7], 4
      %s51 = int_to_ptr.vmem [resolvable:$true] %s50
      %53 = dma.vmem_to_hbm [thread:$0]  %s51, 256, %s2, [#allocation4]
    $region21: #{tpu_custom_call.1} parent=1 // pred_fallthru
      _
    // Predicated region
    $region22: #{tpu_custom_call.1} parent=1 // pred_check
      _
    $region23: #{tpu_custom_call.1} parent=1 // pred_check_branch
      %55 = sbr.rel (0) target = $region25
    $region24: #{tpu_custom_call.1} parent=1 // pred_region
      %56 = dma.done [#allocation4], 256
    $region25: #{tpu_custom_call.1} parent=1 // pred_fallthru
      _
    %57 = vsyncpa [#allocation3], 1
    %58 = vsyncpa [#allocation6], 1
    %59 = vsyncpa [#allocation4], 1

</llo_original>
